<compile_context>
chip_gen: v7x
topology: tpu7x:2x2x1
jax: 0.10.0
libtpu: 0.0.40
codegen_flags: <defaults>
</compile_context>

<pallas_src>
import functools

import jax
import jax.numpy as jnp
import numpy as np
from jax import lax
from jax.experimental import pallas as pl
from jax.experimental.pallas import tpu as pltpu


def _group_norm_silu_kernel(x_ref, w_ref, b_ref, o_ref, *, eps):
    # x_ref: (tb, 1, Cg, HW) -- `tb` samples of one full normalization group
    # w_ref, b_ref: (1, Cg, 1) -- per-channel affine params for this group
    x = x_ref[...].astype(jnp.float32)
    mean = jnp.mean(x, axis=(2, 3), keepdims=True)                   # (tb,1,1,1)
    var = jnp.mean(jnp.square(x - mean), axis=(2, 3), keepdims=True)  # biased var
    inv = lax.rsqrt(var + eps)                                        # EUP
    xn = (x - mean) * inv
    w = w_ref[...].astype(jnp.float32)                                # (1,Cg,1)
    b = b_ref[...].astype(jnp.float32)
    y = xn * w + b                                                    # bcast tb/HW
    sig = 1.0 / (1.0 + jnp.exp(-y))                                   # SiLU (EUP)
    o_ref[...] = (y * sig).astype(o_ref.dtype)


def _pick_tb(n_batch, group_bytes_f32, vmem_budget=8 * 1024 * 1024):
    # Largest batch tile dividing N whose double-buffered in+out blocks fit the budget.
    for cand in (16, 8, 4, 2, 1):
        if n_batch % cand == 0 and 4 * cand * group_bytes_f32 <= vmem_budget:
            return cand
    return 1


def group_norm_silu(x, num_groups, weight, bias, eps=1e-5):
    """y = SiLU(GroupNorm(x, num_groups, weight, bias, eps)); x is (N, C, *spatial)."""
    N, C = x.shape[0], x.shape[1]
    spatial = x.shape[2:]
    HW = int(np.prod(spatial)) if spatial else 1
    G = int(num_groups)
    assert C % G == 0, "channels must be divisible by num_groups"
    Cg = C // G

    x4 = x.reshape(N, G, Cg, HW)
    w3 = weight.reshape(G, Cg, 1)
    b3 = bias.reshape(G, Cg, 1)

    tb = _pick_tb(N, Cg * HW * 4)

    total = x.size
    cost = pl.CostEstimate(
        flops=10 * total,
        transcendentals=total,
        bytes_accessed=2 * total * x.dtype.itemsize + 2 * C * 4,
    )

    out = pl.pallas_call(
        functools.partial(_group_norm_silu_kernel, eps=float(eps)),
        out_shape=jax.ShapeDtypeStruct((N, G, Cg, HW), x.dtype),
        grid_spec=pltpu.PrefetchScalarGridSpec(
            num_scalar_prefetch=0,
            grid=(N // tb, G),
            in_specs=[
                pl.BlockSpec((tb, 1, Cg, HW), lambda b, g: (b, g, 0, 0)),
                pl.BlockSpec((1, Cg, 1), lambda b, g: (g, 0, 0)),
                pl.BlockSpec((1, Cg, 1), lambda b, g: (g, 0, 0)),
            ],
            out_specs=pl.BlockSpec((tb, 1, Cg, HW), lambda b, g: (b, g, 0, 0)),
        ),
        compiler_params=pltpu.CompilerParams(
            dimension_semantics=("parallel", "parallel"),
        ),
        cost_estimate=cost,
    )(x4, w3, b3)

    return out.reshape(x.shape)


def _group_norm_silu_ref(x, num_groups, weight, bias, eps=1e-5):
    N, C = x.shape[0], x.shape[1]
    G = int(num_groups)
    xr = x.reshape(N, G, -1).astype(jnp.float32)
    mean = jnp.mean(xr, axis=-1, keepdims=True)
    var = jnp.mean(jnp.square(xr - mean), axis=-1, keepdims=True)
    xn = ((xr - mean) * lax.rsqrt(var + eps)).reshape(N, C, *x.shape[2:])
    bshape = (1, C) + (1,) * (x.ndim - 2)
    y = xn * weight.reshape(bshape).astype(jnp.float32) + bias.reshape(bshape).astype(jnp.float32)
    return (y * jax.nn.sigmoid(y)).astype(x.dtype)


if __name__ == "__main__":
    # Small shapes consistent with a GroupNorm inside a diffusion block:
    # batch=2, channels=4, spatial=16x16 (HW=256 -> lane-dense), num_groups=2.
    batch, channels, height, width = 2, 4, 16, 16
    num_groups = 2
    eps = 1e-5

    key = jax.random.PRNGKey(0)
    kx, kw, kb = jax.random.split(key, 3)

    x = jax.random.normal(kx, (batch, channels, height, width), dtype=jnp.float32)
    weight = 1.0 + 0.1 * jax.random.normal(kw, (channels,), dtype=jnp.float32)
    bias = 0.1 * jax.random.normal(kb, (channels,), dtype=jnp.float32)

    y = group_norm_silu(x, num_groups, weight, bias, eps)
    y = jax.block_until_ready(y)

    y_ref = _group_norm_silu_ref(x, num_groups, weight, bias, eps)
    assert y.shape == x.shape
    assert jnp.allclose(y, y_ref, atol=2e-5, rtol=1e-5), float(
        jnp.max(jnp.abs(y.astype(jnp.float32) - y_ref.astype(jnp.float32)))
    )

    print("KERNEL_OK")
</pallas_src>

<mosaic_0001>
module attributes {stable_mosaic.version = 11 : i64} {
  func.func @_group_norm_silu_kernel(%arg0: i32, %arg1: i32, %arg2: memref<2x1x2x256xf32, #tpu.memory_space<vmem>>, %arg3: memref<1x2x1xf32, #tpu.memory_space<vmem>>, %arg4: memref<1x2x1xf32, #tpu.memory_space<vmem>>, %arg5: memref<2x1x2x256xf32, #tpu.memory_space<vmem>>) attributes {dimension_semantics = [#tpu.dimension_semantics<parallel>, #tpu.dimension_semantics<parallel>], iteration_bounds = array<i64: 1, 2>, scalar_prefetch = 0 : i64, scratch_operands = 0 : i64, tpu.core_type = #tpu.core_type<tc>, window_params = [{transform_indices = @transform_0, window_bounds = array<i64: 2, 1, 2, 256>}, {transform_indices = @transform_1, window_bounds = array<i64: 1, 2, 1>}, {transform_indices = @transform_2, window_bounds = array<i64: 1, 2, 1>}, {transform_indices = @transform_3, window_bounds = array<i64: 2, 1, 2, 256>}]} {
    %c0 = arith.constant 0 : index
    %c0_0 = arith.constant 0 : index
    %c0_1 = arith.constant 0 : index
    %c0_2 = arith.constant 0 : index
    %0 = vector.load %arg2[%c0, %c0_0, %c0_1, %c0_2] : memref<2x1x2x256xf32, #tpu.memory_space<vmem>>, vector<2x1x2x256xf32>
    %cst = arith.constant dense<0.000000e+00> : vector<2x1xf32>
    %1 = vector.multi_reduction <add>, %0, %cst [2, 3] : vector<2x1x2x256xf32> to vector<2x1xf32>
    %2 = vector.shape_cast %1 : vector<2x1xf32> to vector<2x1x1x1xf32>
    %cst_3 = arith.constant 5.120000e+02 : f32
    %3 = vector.broadcast %cst_3 : f32 to vector<2x1x1x1xf32>
    %4 = arith.divf %2, %3 : vector<2x1x1x1xf32>
    %5 = vector.broadcast %4 : vector<2x1x1x1xf32> to vector<2x1x2x256xf32>
    %6 = arith.subf %0, %5 : vector<2x1x2x256xf32>
    %7 = arith.mulf %6, %6 : vector<2x1x2x256xf32>
    %cst_4 = arith.constant dense<0.000000e+00> : vector<2x1xf32>
    %8 = vector.multi_reduction <add>, %7, %cst_4 [2, 3] : vector<2x1x2x256xf32> to vector<2x1xf32>
    %9 = vector.shape_cast %8 : vector<2x1xf32> to vector<2x1x1x1xf32>
    %cst_5 = arith.constant 5.120000e+02 : f32
    %10 = vector.broadcast %cst_5 : f32 to vector<2x1x1x1xf32>
    %11 = arith.divf %9, %10 : vector<2x1x1x1xf32>
    %cst_6 = arith.constant 9.99999974E-6 : f32
    %12 = vector.broadcast %cst_6 : f32 to vector<2x1x1x1xf32>
    %13 = arith.addf %11, %12 : vector<2x1x1x1xf32>
    %14 = math.rsqrt %13 : vector<2x1x1x1xf32>
    %15 = vector.broadcast %4 : vector<2x1x1x1xf32> to vector<2x1x2x256xf32>
    %16 = arith.subf %0, %15 : vector<2x1x2x256xf32>
    %17 = vector.broadcast %14 : vector<2x1x1x1xf32> to vector<2x1x2x256xf32>
    %18 = arith.mulf %16, %17 : vector<2x1x2x256xf32>
    %c0_7 = arith.constant 0 : index
    %c0_8 = arith.constant 0 : index
    %c0_9 = arith.constant 0 : index
    %19 = vector.load %arg3[%c0_7, %c0_8, %c0_9] : memref<1x2x1xf32, #tpu.memory_space<vmem>>, vector<1x2x1xf32>
    %c0_10 = arith.constant 0 : index
    %c0_11 = arith.constant 0 : index
    %c0_12 = arith.constant 0 : index
    %20 = vector.load %arg4[%c0_10, %c0_11, %c0_12] : memref<1x2x1xf32, #tpu.memory_space<vmem>>, vector<1x2x1xf32>
    %21 = vector.shape_cast %19 : vector<1x2x1xf32> to vector<1x1x2x1xf32>
    %22 = vector.broadcast %21 : vector<1x1x2x1xf32> to vector<2x1x2x256xf32>
    %23 = arith.mulf %18, %22 : vector<2x1x2x256xf32>
    %24 = vector.shape_cast %20 : vector<1x2x1xf32> to vector<1x1x2x1xf32>
    %25 = vector.broadcast %24 : vector<1x1x2x1xf32> to vector<2x1x2x256xf32>
    %26 = arith.addf %23, %25 : vector<2x1x2x256xf32>
    %cst_13 = arith.constant 0.000000e+00 : f32
    %27 = vector.broadcast %cst_13 : f32 to vector<2x1x2x256xf32>
    %28 = arith.subf %27, %26 : vector<2x1x2x256xf32>
    %29 = math.exp %28 : vector<2x1x2x256xf32>
    %cst_14 = arith.constant 1.000000e+00 : f32
    %30 = vector.broadcast %cst_14 : f32 to vector<2x1x2x256xf32>
    %31 = arith.addf %30, %29 : vector<2x1x2x256xf32>
    %cst_15 = arith.constant 1.000000e+00 : f32
    %32 = vector.broadcast %cst_15 : f32 to vector<2x1x2x256xf32>
    %33 = arith.divf %32, %31 : vector<2x1x2x256xf32>
    %34 = arith.mulf %26, %33 : vector<2x1x2x256xf32>
    %c0_16 = arith.constant 0 : index
    %c0_17 = arith.constant 0 : index
    %c0_18 = arith.constant 0 : index
    %c0_19 = arith.constant 0 : index
    %35 = vector.load %arg5[%c0_16, %c0_17, %c0_18, %c0_19] : memref<2x1x2x256xf32, #tpu.memory_space<vmem>>, vector<2x1x2x256xf32>
    tpu.vector_store %arg5[%c0_16, %c0_17, %c0_18, %c0_19], %34 {strides = array<i32>} : memref<2x1x2x256xf32, #tpu.memory_space<vmem>>, vector<2x1x2x256xf32>,
    return
  }
  func.func @transform_0(%arg0: i32, %arg1: i32) -> (i32, i32, i32, i32) {
    %c0_i32 = arith.constant 0 : i32
    %c0_i32_0 = arith.constant 0 : i32
    %c0_i32_1 = arith.constant 0 : i32
    return %arg0, %arg1, %c0_i32, %c0_i32_0 : i32, i32, i32, i32
  }
  func.func @transform_1(%arg0: i32, %arg1: i32) -> (i32, i32, i32) {
    %c0_i32 = arith.constant 0 : i32
    %c0_i32_0 = arith.constant 0 : i32
    %c0_i32_1 = arith.constant 0 : i32
    return %arg1, %c0_i32, %c0_i32_0 : i32, i32, i32
  }
  func.func @transform_2(%arg0: i32, %arg1: i32) -> (i32, i32, i32) {
    %c0_i32 = arith.constant 0 : i32
    %c0_i32_0 = arith.constant 0 : i32
    %c0_i32_1 = arith.constant 0 : i32
    return %arg1, %c0_i32, %c0_i32_0 : i32, i32, i32
  }
  func.func @transform_3(%arg0: i32, %arg1: i32) -> (i32, i32, i32, i32) {
    %c0_i32 = arith.constant 0 : i32
    %c0_i32_0 = arith.constant 0 : i32
    %c0_i32_1 = arith.constant 0 : i32
    return %arg0, %arg1, %c0_i32, %c0_i32_0 : i32, i32, i32, i32
  }
}

</mosaic_0001>

<llo_original>
// kernel: tpu_custom_call.1
$region0: #{tpu_custom_call.1}
  #allocation0 [shape = 'u32[]', space=smem, size = 0x4, offset = 0x4, fixed_abs, tag = 'smem constant byte address 0x4 - core index']
  #allocation1 [shape = 'u32[144,128]{1,0:T(1,128)}', space=vmem, size = 0x12000, scoped, tag = 'internal scratch']
  %s0 = inlined_call_operand.hbm [shape: f32[2,2,2,256], index: 0, kind: input, shape index: {}]
  %s1 = inlined_call_operand.vmem [shape: f32[2,2,1], index: 1, kind: input, shape index: {}]
  %s2 = inlined_call_operand.vmem [shape: f32[2,2,1], index: 2, kind: input, shape index: {}]
  %s3 = inlined_call_operand.hbm [shape: f32[2,2,2,256], index: 3, kind: output, shape index: {}]
  %s4 = sld [smem:[#allocation0]]
  $region49: #{tpu_custom_call.1} parent=0
    _
  %s6 = ssub.s32 1, %s4
  %s7 = scalar_select 0, %s6, %s4
  $region1: #{tpu_custom_call.1} parent=0
    #allocation2 [shape = 'u8[8192]{0}', space=vmem, size = 0x2000, scoped, tag = 'input window, operand 0']
    #allocation3 [shape = 's32[2]{0}', space=sflag, size = 0x8, scoped, tag = 'scoped memory for tpu_custom_call.1']
    #allocation4 [shape = 's32[2]{0}', space=sflag, size = 0x8, scoped, tag = 'scoped memory for tpu_custom_call.1']
    #allocation5 [shape = 'u8[8192]{0}', space=vmem, size = 0x2000, scoped, tag = 'output window, operand 0']
    %8 = vsyncpa [#allocation3], 0
    %s9 = scalar_lea.sflag [#allocation3], 1
    %10 = vsyncpa %s9, 0
    %11 = vsyncpa [#allocation4], 0
    %s12 = scalar_lea.sflag [#allocation4], 1
    %13 = vsyncpa %s12, 0
    loop: start=0, step=1, limit=4
    $region2: #{tpu_custom_call.1} parent=1 // loop_pre_header
      _
    $region3: #{tpu_custom_call.1} parent=1 // loop_header
      %s15 = sphi 0, %s19
      %p16 = scmp.ge.s32.totalorder %s15, 4
      %s22 = sphi 0, %s34
      %s23 = sphi 0, %s30
      %s24 = sphi 0, %s22
      %s25 = sphi 0, %s23
      %s26 = sphi 0, %s24
      %s27 = sphi 0, %s25
      %s39 = sphi 0, %s41
      %s42 = sphi 0, %s39
      %s43 = sphi 0, %s42
      %s59 = sphi 0, %s43
      %s65 = sphi 0, %s67
      %s68 = sphi 0, %s65
      %s69 = sphi 0, %s68
      %s85 = sphi 0, %s69
      %s91 = sphi 0, %s93
      %s94 = sphi 0, %s91
      %s95 = sphi 0, %s94
      %s111 = sphi 0, %s95
      %s119 = sphi 0, %s121
      %s122 = sphi 0, %s119
      %s123 = sphi 0, %s122
      %s139 = sphi 0, %s123
    $region4: #{tpu_custom_call.1} parent=1 // loop_header_branch
      %18 = sbr.rel (%p16) target = $region8
    $region5: #{tpu_custom_call.1} parent=1 // loop_body
      %s20 = ssub.s32 %s15, 1
      %s21 = ssub.s32 %s15, 2
      %s28 = sadd.s32 1, %s23
      %p29 = scmp.ge.s32.totalorder %s28, 2
      %s30 = scalar_select %p29, 0, %s28
      %s31 = sadd.s32 1, %s22
      %s32 = scalar_select %p29, %s31, %s22
      %p33 = scmp.ge.s32.totalorder %s32, 1
      %s34 = scalar_select %p33, 0, %s32
      %s35 = ssub.s32 %s22, %s34
      %s36 = ssub.s32 %s23, %s30
      %s37 = sor.u32 %s35, %s36
      %p38 = scmp.eq.s32.totalorder %s37, 0
      %s40 = sadd.s32 %s39, 1
      %s41 = scalar_select %p38, %s39, %s40
      %p44 = pneg %p38
      %p45 = scmp.eq.s32.totalorder %s15, 1
      %p46 = por %p44, %p45
      %p47 = scmp.ne.s32.totalorder %s39, %s42
      %p48 = scmp.eq.s32.totalorder %s15, 0
      %p49 = por %p47, %p48
      %p50 = scmp.ne.s32.totalorder %s39, %s42
      %p51 = scmp.eq.s32.totalorder %s20, 1
      %p52 = por %p50, %p51
      %p53 = scmp.ne.s32.totalorder %s42, %s43
      %p54 = scmp.eq.s32.totalorder %s20, 0
      %p55 = por %p53, %p54
      %p56 = scmp.ne.s32.totalorder %s42, %s43
      %p57 = scmp.eq.s32.totalorder %s21, 1
      %p58 = por %p56, %p57
      %p60 = scmp.ne.s32.totalorder %s43, %s59
      %p61 = scmp.eq.s32.totalorder %s21, 0
      %p62 = por %p60, %p61
      %s63 = ssub.s32 %s23, %s30
      %p64 = scmp.eq.s32.totalorder %s63, 0
      %s66 = sadd.s32 %s65, 1
      %s67 = scalar_select %p64, %s65, %s66
      %p70 = pneg %p64
      %p71 = scmp.eq.s32.totalorder %s15, 1
      %p72 = por %p70, %p71
      %p73 = scmp.ne.s32.totalorder %s65, %s68
      %p74 = scmp.eq.s32.totalorder %s15, 0
      %p75 = por %p73, %p74
      %p76 = scmp.ne.s32.totalorder %s65, %s68
      %p77 = scmp.eq.s32.totalorder %s20, 1
      %p78 = por %p76, %p77
      %p79 = scmp.ne.s32.totalorder %s68, %s69
      %p80 = scmp.eq.s32.totalorder %s20, 0
      %p81 = por %p79, %p80
      %p82 = scmp.ne.s32.totalorder %s68, %s69
      %p83 = scmp.eq.s32.totalorder %s21, 1
      %p84 = por %p82, %p83
      %p86 = scmp.ne.s32.totalorder %s69, %s85
      %p87 = scmp.eq.s32.totalorder %s21, 0
      %p88 = por %p86, %p87
      %s89 = ssub.s32 %s23, %s30
      %p90 = scmp.eq.s32.totalorder %s89, 0
      %s92 = sadd.s32 %s91, 1
      %s93 = scalar_select %p90, %s91, %s92
      %p96 = pneg %p90
      %p97 = scmp.eq.s32.totalorder %s15, 1
      %p98 = por %p96, %p97
      %p99 = scmp.ne.s32.totalorder %s91, %s94
      %p100 = scmp.eq.s32.totalorder %s15, 0
      %p101 = por %p99, %p100
      %p102 = scmp.ne.s32.totalorder %s91, %s94
      %p103 = scmp.eq.s32.totalorder %s20, 1
      %p104 = por %p102, %p103
      %p105 = scmp.ne.s32.totalorder %s94, %s95
      %p106 = scmp.eq.s32.totalorder %s20, 0
      %p107 = por %p105, %p106
      %p108 = scmp.ne.s32.totalorder %s94, %s95
      %p109 = scmp.eq.s32.totalorder %s21, 1
      %p110 = por %p108, %p109
      %p112 = scmp.ne.s32.totalorder %s95, %s111
      %p113 = scmp.eq.s32.totalorder %s21, 0
      %p114 = por %p112, %p113
      %s115 = ssub.s32 %s22, %s34
      %s116 = ssub.s32 %s23, %s30
      %s117 = sor.u32 %s115, %s116
      %p118 = scmp.eq.s32.totalorder %s117, 0
      %s120 = sadd.s32 %s119, 1
      %s121 = scalar_select %p118, %s119, %s120
      %p124 = pneg %p118
      %p125 = scmp.eq.s32.totalorder %s15, 1
      %p126 = por %p124, %p125
      %p127 = scmp.ne.s32.totalorder %s119, %s122
      %p128 = scmp.eq.s32.totalorder %s15, 0
      %p129 = por %p127, %p128
      %p130 = scmp.ne.s32.totalorder %s119, %s122
      %p131 = scmp.eq.s32.totalorder %s20, 1
      %p132 = por %p130, %p131
      %p133 = scmp.ne.s32.totalorder %s122, %s123
      %p134 = scmp.eq.s32.totalorder %s20, 0
      %p135 = por %p133, %p134
      %p136 = scmp.ne.s32.totalorder %s122, %s123
      %p137 = scmp.eq.s32.totalorder %s21, 1
      %p138 = por %p136, %p137
      %p140 = scmp.ne.s32.totalorder %s123, %s139
      %p141 = scmp.eq.s32.totalorder %s21, 0
      %p142 = por %p140, %p141
      %p143 = scmp.le.s32.totalorder 1, %s15
      %p144 = scmp.lt.s32.totalorder %s15, 3
      %p145 = pnand %p143, %p144
      %p146 = pneg %p145
      // Predicated region
      $region9: #{tpu_custom_call.1} parent=5 // pred_check
        _
      $region10: #{tpu_custom_call.1} parent=5 // pred_check_branch
        %148 = sbr.rel (%p145) target = $region12
      $region11: #{tpu_custom_call.1} parent=5 // pred_region
        %s149 = ssub.s32 %s15, 1
      $region12: #{tpu_custom_call.1} parent=5 // pred_fallthru
        _
      %p150 = scmp.lt.s32.totalorder %s15, 2
      // Predicated region
      $region13: #{tpu_custom_call.1} parent=5 // pred_check
        %p151 = pneg %p150
      $region14: #{tpu_custom_call.1} parent=5 // pred_check_branch
        %153 = sbr.rel (%p151) target = $region16
      $region15: #{tpu_custom_call.1} parent=5 // pred_region
        // Predicated region
        $region17: #{tpu_custom_call.1} parent=15 // pred_check
          %p154 = pneg %p49
        $region18: #{tpu_custom_call.1} parent=15 // pred_check_branch
          %156 = sbr.rel (%p154) target = $region20
        $region19: #{tpu_custom_call.1} parent=15 // pred_region
          %s157 = sand.u32 %s39, 1
          %s158 = scalar_lea.sflag [#allocation3], %s157
          %s159 = sand.u32 %s39, 1
          %s160 = smul.addr %s159, 8
          %s161 = scalar_lea.vmem [#allocation2], %s160
          %s162 = smul.u32 2, %s22
          %s164 = ssub.s32 128, 128
          %165 = vsyncadd %s158, %s164
          %s166 = smul.addr %s23, 2
          %s167 = smul.addr %s162, 4
          %s168 = sadd.s32 %s166, %s167
          %s169 = smul.addr %s168, 32
          %s170 = scalar_lea.hbm %s0, %s169
          %s171 = sshll.u32 %s161, 4
          %s172 = int_to_ptr.vmem [resolvable:$true] %s171
          %177 = dma.hbm_to_vmem [thread:$0]  %s170, 128, %s172, %s158, 128, 64, 4
        $region20: #{tpu_custom_call.1} parent=15 // pred_fallthru
          _
        // Predicated region
        $region21: #{tpu_custom_call.1} parent=15 // pred_check
          %p178 = pneg %p75
        $region22: #{tpu_custom_call.1} parent=15 // pred_check_branch
          %180 = sbr.rel (%p178) target = $region24
        $region23: #{tpu_custom_call.1} parent=15 // pred_region
          %p181 = scmp.lt.s32.totalorder %s23, 1
          %s182 = scalar_select %p181, %s23, 1
          %s183 = smul.addr %s182, 2
          %s184 = scalar_lea.vmem %s1, %s183
        $region24: #{tpu_custom_call.1} parent=15 // pred_fallthru
          _
        // Predicated region
        $region25: #{tpu_custom_call.1} parent=15 // pred_check
          %p185 = pneg %p101
        $region26: #{tpu_custom_call.1} parent=15 // pred_check_branch
          %187 = sbr.rel (%p185) target = $region28
        $region27: #{tpu_custom_call.1} parent=15 // pred_region
          %p188 = scmp.lt.s32.totalorder %s23, 1
          %s189 = scalar_select %p188, %s23, 1
          %s190 = smul.addr %s189, 2
          %s191 = scalar_lea.vmem %s2, %s190
        $region28: #{tpu_custom_call.1} parent=15 // pred_fallthru
          _
      $region16: #{tpu_custom_call.1} parent=5 // pred_fallthru
        _
      %p192 = scmp.le.s32.totalorder 1, %s15
      %p193 = scmp.lt.s32.totalorder %s15, 3
      %p194 = pnand %p192, %p193
      %p195 = pneg %p194
      // Predicated region
      $region29: #{tpu_custom_call.1} parent=5 // pred_check
        _
      $region30: #{tpu_custom_call.1} parent=5 // pred_check_branch
        %197 = sbr.rel (%p194) target = $region32
      $region31: #{tpu_custom_call.1} parent=5 // pred_region
        %s198 = ssub.s32 %s15, 1
        %s199 = sand.u32 %s42, 1
        %s200 = scalar_lea.sflag [#allocation3], %s199
        %s201 = sand.u32 %s42, 1
        %s202 = smul.addr %s201, 8
        %s203 = scalar_lea.vmem [#allocation2], %s202
        // Predicated region
        $region33: #{tpu_custom_call.1} parent=31 // pred_check
          %p204 = pneg %p55
        $region34: #{tpu_custom_call.1} parent=31 // pred_check_branch
          %206 = sbr.rel (%p204) target = $region36
        $region35: #{tpu_custom_call.1} parent=31 // pred_region
          %207 = dma.done %s200, 128
        $region36: #{tpu_custom_call.1} parent=31 // pred_fallthru
          _
        %s208 = sand.u32 %s42, 1
        %s209 = scalar_lea.sflag [#allocation3], %s208
        %s210 = sand.u32 %s42, 1
        %s211 = smul.addr %s210, 8
        %s212 = scalar_lea.vmem [#allocation2], %s211
        %p213 = pneg %p55
        %p214 = pneg %p52
        %p215 = scmp.lt.s32.totalorder %s25, 1
        %s216 = scalar_select %p215, %s25, 1
        %s217 = smul.addr %s216, 2
        %s218 = scalar_lea.vmem %s1, %s217
        %p219 = pneg %p81
        %p220 = pneg %p78
        %p221 = scmp.lt.s32.totalorder %s25, 1
        %s222 = scalar_select %p221, %s25, 1
        %s223 = smul.addr %s222, 2
        %s224 = scalar_lea.vmem %s2, %s223
        %p225 = pneg %p107
        %p226 = pneg %p104
        %p227 = pneg %p135
        %p228 = pneg %p132
        %s229 = sand.u32 %s122, 1
        %s230 = scalar_lea.sflag [#allocation4], %s229
        %s231 = sand.u32 %s122, 1
        %s232 = smul.addr %s231, 8
        %s233 = scalar_lea.vmem [#allocation5], %s232
        %s234 = smul.u32 2, %s24
        %p235 = scmp.lt.s32.totalorder %s25, 1
        %s236 = scalar_select %p235, %s25, 1
        %s237 = smul.addr %s236, 2
        %s238 = scalar_lea.vmem %s1, %s237
        %p239 = scmp.lt.s32.totalorder %s25, 1
        %s240 = scalar_select %p239, %s25, 1
        %s241 = smul.addr %s240, 2
        %s242 = scalar_lea.vmem %s2, %s241
        %s243 = smul.u32 2, %s24
        %v244 = vld [vmem:[%s203] sm:$0xf]
        %v245 = vld [vmem:[%s203 + $0x4] sm:$0xf]
        %v249 = vunpack.c.l.s4 1983009808
        %v250 = vunpack.c.0.s8 %v249
        %v251 = vlaneseq
        %v252 = vshrl.u32 %v251, 7
        %v253 = vsub.s32 %v250, %v252
        %v254 = vrot.slane %v244, %v253
        %v255 = vcombine.high %v254, %v254
        %v257 = vunpack.c.l.s4 1983009808
        %v258 = vunpack.c.0.s8 %v257
        %v259 = vlaneseq
        %v260 = vshrl.u32 %v259, 7
        %v261 = vsub.s32 %v258, %v260
        %v262 = vrot.slane %v245, %v261
        %v263 = vcombine.high %v262, %v262
        %vm268 = vcmask 1041408
        %v269 = vsel %vm268, %v254, 0.0
        %v270 = vsel %vm268, %v255, 0.0
        %v271 = vadd.f32 %v269, %v270
        %272 = vadd.xlane.f32.xlu0 %v271
        %v273 = vpop.xlane.xlu0 %272
        %v274 = vrot.slane %v273, 4
        %v275 = vadd.f32 %v273, %v274
        %v276 = vrot.slane %v275, 2
        %v277 = vadd.f32 %v275, %v276
        %v278 = vrot.slane %v277, 1
        %v279 = vadd.f32 %v277, %v278
        %v280 = vsel %vm268, %v262, 0.0
        %v281 = vsel %vm268, %v263, 0.0
        %v282 = vadd.f32 %v280, %v281
        %283 = vadd.xlane.f32.xlu0 %v282
        %v284 = vpop.xlane.xlu0 %283
        %v285 = vrot.slane %v284, 4
        %v286 = vadd.f32 %v284, %v285
        %v287 = vrot.slane %v286, 2
        %v288 = vadd.f32 %v286, %v287
        %v289 = vrot.slane %v288, 1
        %v290 = vadd.f32 %v288, %v289
        %v291 = vrcp.pop 512.0
        %v292 = vmul.f32 %v279, %v291
        %v293 = vmul.f32 %v290, %v291
        %v294 = vsub.f32 %v244, %v292
        %v295 = vsub.f32 %v245, %v293
        %v296 = vmul.f32 %v294, %v294
        %v297 = vmul.f32 %v295, %v295
        %v301 = vunpack.c.l.s4 1983009808
        %v302 = vunpack.c.0.s8 %v301
        %v303 = vlaneseq
        %v304 = vshrl.u32 %v303, 7
        %v305 = vsub.s32 %v302, %v304
        %v306 = vrot.slane %v296, %v305
        %v307 = vcombine.high %v306, %v306
        %v309 = vunpack.c.l.s4 1983009808
        %v310 = vunpack.c.0.s8 %v309
        %v311 = vlaneseq
        %v312 = vshrl.u32 %v311, 7
        %v313 = vsub.s32 %v310, %v312
        %v314 = vrot.slane %v297, %v313
        %v315 = vcombine.high %v314, %v314
        %v320 = vsel %vm268, %v306, 0.0
        %v321 = vsel %vm268, %v307, 0.0
        %v322 = vadd.f32 %v320, %v321
        %323 = vadd.xlane.f32.xlu0 %v322
        %v324 = vpop.xlane.xlu0 %323
        %v325 = vrot.slane %v324, 4
        %v326 = vadd.f32 %v324, %v325
        %v327 = vrot.slane %v326, 2
        %v328 = vadd.f32 %v326, %v327
        %v329 = vrot.slane %v328, 1
        %v330 = vadd.f32 %v328, %v329
        %v331 = vsel %vm268, %v314, 0.0
        %v332 = vsel %vm268, %v315, 0.0
        %v333 = vadd.f32 %v331, %v332
        %334 = vadd.xlane.f32.xlu0 %v333
        %v335 = vpop.xlane.xlu0 %334
        %v336 = vrot.slane %v335, 4
        %v337 = vadd.f32 %v335, %v336
        %v338 = vrot.slane %v337, 2
        %v339 = vadd.f32 %v337, %v338
        %v340 = vrot.slane %v339, 1
        %v341 = vadd.f32 %v339, %v340
        %v342 = vmul.f32 %v330, %v291
        %v343 = vmul.f32 %v341, %v291
        %v344 = vadd.f32 %v342, 1e-05
        %v345 = vadd.f32 %v343, 1e-05
        %v346 = vrsqrt.pop %v344
        %v347 = vrsqrt.pop %v345
        %v348 = vmul.f32 %v294, %v346
        %v349 = vmul.f32 %v295, %v347
        %v350 = vld [vmem:[%s238] sm:$0x3]
        %v351 = vld [vmem:[%s242] sm:$0x3]
        %353 = vset.pattern.permute.xlu0 0
        %354 = vperm.xlu0 %353, %v350
        %v355 = vpop.permute.xlu0 %354
        %v357 = vunpack.c.l.s4 269488144
        %v358 = vunpack.c.0.s8 %v357
        %v359 = vlaneseq
        %v360 = vshrl.u32 %v359, 7
        %v361 = vsub.s32 %v358, %v360
        %v362 = vrot.slane %v355, %v361
        %v364 = vmul.f32 %v348, %v362
        %v365 = vmul.f32 %v349, %v362
        %367 = vset.pattern.permute.xlu0 0
        %368 = vperm.xlu0 %367, %v351
        %v369 = vpop.permute.xlu0 %368
        %v371 = vunpack.c.l.s4 269488144
        %v372 = vunpack.c.0.s8 %v371
        %v373 = vlaneseq
        %v374 = vshrl.u32 %v373, 7
        %v375 = vsub.s32 %v372, %v374
        %v376 = vrot.slane %v369, %v375
        %v378 = vadd.f32 %v364, %v376
        %v379 = vadd.f32 %v365, %v376
        %v380 = vsub.f32 0.0, %v378
        %v381 = vsub.f32 0.0, %v379
        %v382 = vmul.f32 %v380, 1.442695
        %v383 = vpow.pop %v382
        %v384 = vmul.f32 %v381, 1.442695
        %v385 = vpow.pop %v384
        %v386 = vadd.f32 %v383, 1.0
        %v387 = vadd.f32 %v385, 1.0
        %v388 = vrcp.pop %v386
        %v389 = vmul.f32 1.0, %v388
        %v390 = vrcp.pop %v387
        %v391 = vmul.f32 1.0, %v390
        %v392 = vmul.f32 %v378, %v389
        %v393 = vmul.f32 %v379, %v391
        %394 = vst [vmem:[%s233] sm:$0xf] %v392
        %395 = vst [vmem:[%s233 + $0x4] sm:$0xf] %v393
        %s396 = sand.u32 %s122, 1
        %s397 = scalar_lea.sflag [#allocation4], %s396
        %s398 = sand.u32 %s122, 1
        %s399 = smul.addr %s398, 8
        %s400 = scalar_lea.vmem [#allocation5], %s399
        // Predicated region
        $region37: #{tpu_custom_call.1} parent=31 // pred_check
          %p401 = pneg %p132
        $region38: #{tpu_custom_call.1} parent=31 // pred_check_branch
          %403 = sbr.rel (%p401) target = $region40
        $region39: #{tpu_custom_call.1} parent=31 // pred_region
          %s404 = smul.u32 2, %s24
          %s406 = ssub.s32 128, 128
          %407 = vsyncadd %s397, %s406
          %s408 = smul.addr %s25, 2
          %s409 = smul.addr %s404, 4
          %s410 = sadd.s32 %s408, %s409
          %s411 = smul.addr %s410, 32
          %s412 = scalar_lea.hbm %s3, %s411
          %s413 = sshll.u32 %s400, 4
          %s414 = int_to_ptr.vmem [resolvable:$true] %s413
          %419 = dma.vmem_to_hbm [thread:$0]  %s414, 128, %s412, %s397, 64, 128, 4
        $region40: #{tpu_custom_call.1} parent=31 // pred_fallthru
          _
      $region32: #{tpu_custom_call.1} parent=5 // pred_fallthru
        _
      %p420 = scmp.le.s32.totalorder 2, %s15
      // Predicated region
      $region41: #{tpu_custom_call.1} parent=5 // pred_check
        %p421 = pneg %p420
      $region42: #{tpu_custom_call.1} parent=5 // pred_check_branch
        %423 = sbr.rel (%p421) target = $region44
      $region43: #{tpu_custom_call.1} parent=5 // pred_region
        %s424 = ssub.s32 %s15, 2
        // Predicated region
        $region45: #{tpu_custom_call.1} parent=43 // pred_check
          %p425 = pneg %p138
        $region46: #{tpu_custom_call.1} parent=43 // pred_check_branch
          %427 = sbr.rel (%p425) target = $region48
        $region47: #{tpu_custom_call.1} parent=43 // pred_region
          %s428 = sand.u32 %s123, 1
          %s429 = scalar_lea.sflag [#allocation4], %s428
          %s430 = sand.u32 %s123, 1
          %s431 = smul.addr %s430, 8
          %s432 = scalar_lea.vmem [#allocation5], %s431
          %433 = dma.done %s429, 128
        $region48: #{tpu_custom_call.1} parent=43 // pred_fallthru
          _
      $region44: #{tpu_custom_call.1} parent=5 // pred_fallthru
        _
    $region6: #{tpu_custom_call.1} parent=1 // loop_footer
      %s19 = sadd.s32 1, %s15
    $region7: #{tpu_custom_call.1} parent=1 // loop_footer_branch
      %14 = sbr.rel target = $region3
    $region8: #{tpu_custom_call.1} parent=1 // loop_exit
      _
    %434 = vsyncpa [#allocation3], 1
    %s435 = scalar_lea.sflag [#allocation3], 1
    %436 = vsyncpa %s435, 1
    %437 = vsyncpa [#allocation4], 1
    %s438 = scalar_lea.sflag [#allocation4], 1
    %439 = vsyncpa %s438, 1

</llo_original>
